<compile_context>
chip_gen: v5e
topology: v5e:2x2
jax: 0.10.0
libtpu: 0.0.40
codegen_flags: <defaults>
</compile_context>

<pallas_src>
import jax
import jax.numpy as jnp
from jax.experimental import pallas as pl
from jax.experimental.pallas import tpu as pltpu

# Module __init__ defaults (no learned parameters).
C1 = 0.01 ** 2
C2 = 0.03 ** 2


def _loss_kernel(pred_ref, target_ref, rowband_ref, colband_ref, out_ref):
    """One grid step: one (SH, GW) slab = S stacked slices x G folded images."""
    p = pred_ref[0].astype(jnp.float32)        # (SH, GW)
    t = target_ref[0].astype(jnp.float32)
    A = rowband_ref[...]                       # (SH, SH) 0/1 band, block-diag per slice
    Bm = colband_ref[...]                      # (GW, GW) 0/1 band, block-diag per image

    def box3_mean(x):
        # Separable 3x3 box filter on the MXU: lane pass (x @ B) then sublane
        # pass (A @ .), then /9 (count_include_pad=True semantics).
        lane_sum = jnp.dot(x, Bm, preferred_element_type=jnp.float32)
        full_sum = jnp.dot(A, lane_sum, preferred_element_type=jnp.float32)
        return full_sum * jnp.float32(1.0 / 9.0)

    # ---- SSIM map (mirrors the reference SSIMLoss exactly) ----
    mean_p = box3_mean(p)
    mean_t = box3_mean(t)
    std_p = box3_mean(p - mean_p)              # reference pools the unsquared deviation
    std_t = box3_mean(t - mean_t)

    num = (2.0 * mean_p * mean_t + C1) * (2.0 * std_p * std_t + C2)
    den = (mean_p * mean_p + mean_t * mean_t + C1) * \
          (std_p * std_p + std_t * std_t + C2)
    # EUP reciprocal (separate bundle slot). Validate vs. reference: f32-level match.
    ssim_map = num * pl.reciprocal(den, approx=True)

    # ---- per-step partial sums (combined in the wrapper) ----
    diff = p - t
    ssim_sum = jnp.sum(ssim_map)
    l1_sum = jnp.sum(jnp.abs(diff))
    sq_sum = jnp.sum(diff * diff)

    lane = jax.lax.broadcasted_iota(jnp.int32, (8, 128), 1)
    row = jnp.where(lane == 0, ssim_sum,
          jnp.where(lane == 1, l1_sum,
          jnp.where(lane == 2, sq_sum, jnp.float32(0.0))))
    out_ref[0] = row


def _band_matrix(n, block):
    """(n, n) f32 matrix with 1 where |i-j|<=1 AND i,j are in the same `block`."""
    idx = jnp.arange(n)
    same_block = (idx[:, None] // block) == (idx[None, :] // block)
    near = jnp.abs(idx[:, None] - idx[None, :]) <= 1
    return (same_block & near).astype(jnp.float32)


def l1_psnr_ssim_loss(pred, target, *, w1=100.0, w2=10.0, w3=1.0):
    """Scalar loss = w1*SSIMLoss + w2*L1 + w3*PSNRLoss (max_value = 1.0)."""
    assert pred.shape == target.shape, "pred/target shape mismatch"
    B, C, H, W = pred.shape
    N = B * C

    # ---- lane fold: only when W < 128 (avoids an HBM-materializing transpose) ----
    if W >= 128:
        G = 1
    else:
        G = 1
        max_g = max(1, min(N, 1024 // W))
        for g in range(max_g, 0, -1):
            if N % g == 0:
                G = g
                break
    GW = G * W
    groups = N // G

    # ---- sublane fold: stack S whole groups per step (free reshape) ----
    # Keep per-input block around <=2 MiB and the band-matmul cost bounded.
    max_sh = max(H, min(512, (2 * 1024 * 1024 // 4) // max(GW, 1)))
    max_s = max(1, min(groups, max_sh // H))
    S = 1
    for s in range(max_s, 0, -1):
        if groups % s == 0:
            S = s
            break
    SH = S * H
    steps = groups // S
    # TODO(synk): for very large H*W (single slice >> VMEM, or SH+GW so large the
    # band matmul dominates), switch to a halo-tiled spatial decomposition.

    def prep(x):
        x = x.reshape(N, H, W)
        if G > 1:
            # Fold G whole images side-by-side along the lane axis (transpose copy,
            # only taken for small-W inputs).
            x = (x.reshape(groups, G, H, W)
                  .transpose(0, 2, 1, 3)
                  .reshape(groups, H, GW))
        # Stack S groups along the sublane axis: contiguous reshape, free.
        return x.reshape(steps, SH, GW)

    p = prep(pred)
    t = prep(target)
    row_band = _band_matrix(SH, H)   # block-diagonal per stacked slice
    col_band = _band_matrix(GW, W)   # block-diagonal per folded image

    partials = pl.pallas_call(
        _loss_kernel,
        out_shape=jax.ShapeDtypeStruct((steps, 8, 128), jnp.float32),
        grid_spec=pltpu.PrefetchScalarGridSpec(
            num_scalar_prefetch=0,
            grid=(steps,),
            in_specs=[
                pl.BlockSpec((1, SH, GW), lambda i: (i, 0, 0)),
                pl.BlockSpec((1, SH, GW), lambda i: (i, 0, 0)),
                pl.BlockSpec((SH, SH), lambda i: (0, 0)),   # resident, fetched once
                pl.BlockSpec((GW, GW), lambda i: (0, 0)),   # resident, fetched once
            ],
            out_specs=pl.BlockSpec((1, 8, 128), lambda i: (i, 0, 0)),
        ),
        # Independent per-step partials -> safe to shard across both TCs on v7x.
        # TODO(synk): on v6e, raise vmem_limit_bytes (128 MiB physical) together
        # with a larger SH cap once profiled; 32 MiB is safe on all generations.
        compiler_params=pltpu.CompilerParams(
            dimension_semantics=("parallel",),
            vmem_limit_bytes=32 * 1024 * 1024,
        ),
    )(p, t, row_band, col_band)

    # ---- tiny finalize in the wrapper ----
    parts = partials[:, 0, :]                       # (steps, 128)
    inv_n = jnp.float32(1.0) / jnp.float32(N * H * W)
    ssim_mean = jnp.sum(parts[:, 0]) * inv_n
    l1_mean = jnp.sum(parts[:, 1]) * inv_n
    mse = jnp.sum(parts[:, 2]) * inv_n
    # PSNRLoss with max_value=1.0: -psnr = -(20*(log10(1) - log10(mse))) = 20*log10(mse)
    psnr_loss = 20.0 * jnp.log10(mse)
    return w1 * (-ssim_mean) + w2 * l1_mean + w3 * psnr_loss


if __name__ == "__main__":
    key = jax.random.PRNGKey(0)
    kp, kt = jax.random.split(key)
    shape = (2, 4, 16, 16)  # NCHW, matching the PyTorch conv/pool convention
    pred = jax.random.uniform(kp, shape, dtype=jnp.float32)
    target = jax.random.uniform(kt, shape, dtype=jnp.float32)

    loss = l1_psnr_ssim_loss(pred, target)
    jax.block_until_ready(loss)
    print("KERNEL_OK")
</pallas_src>

<mosaic_0001>
module attributes {stable_mosaic.version = 11 : i64} {
  func.func @_loss_kernel(%arg0: i32, %arg1: memref<1x16x128xf32, #tpu.memory_space<vmem>>, %arg2: memref<1x16x128xf32, #tpu.memory_space<vmem>>, %arg3: memref<16x16xf32, #tpu.memory_space<vmem>>, %arg4: memref<128x128xf32, #tpu.memory_space<vmem>>, %arg5: memref<1x8x128xf32, #tpu.memory_space<vmem>>) attributes {dimension_semantics = [#tpu.dimension_semantics<parallel>], iteration_bounds = array<i64: 1>, scalar_prefetch = 0 : i64, scratch_operands = 0 : i64, tpu.core_type = #tpu.core_type<tc>, window_params = [{transform_indices = @transform_0, window_bounds = array<i64: 1, 16, 128>}, {transform_indices = @transform_1, window_bounds = array<i64: 1, 16, 128>}, {pipeline_mode = #tpu.pipeline_mode<synchronous>, transform_indices = @transform_2, window_bounds = array<i64: 16, 16>}, {pipeline_mode = #tpu.pipeline_mode<synchronous>, transform_indices = @transform_3, window_bounds = array<i64: 128, 128>}, {transform_indices = @transform_4, window_bounds = array<i64: 1, 8, 128>}]} {
    %c0 = arith.constant 0 : index
    %c0_0 = arith.constant 0 : index
    %c0_1 = arith.constant 0 : index
    %0 = vector.load %arg1[%c0, %c0_0, %c0_1] : memref<1x16x128xf32, #tpu.memory_space<vmem>>, vector<1x16x128xf32>
    %1 = vector.shape_cast %0 : vector<1x16x128xf32> to vector<16x128xf32>
    %c0_2 = arith.constant 0 : index
    %c0_3 = arith.constant 0 : index
    %c0_4 = arith.constant 0 : index
    %2 = vector.load %arg2[%c0_2, %c0_3, %c0_4] : memref<1x16x128xf32, #tpu.memory_space<vmem>>, vector<1x16x128xf32>
    %3 = vector.shape_cast %2 : vector<1x16x128xf32> to vector<16x128xf32>
    %c0_5 = arith.constant 0 : index
    %c0_6 = arith.constant 0 : index
    %4 = vector.load %arg3[%c0_5, %c0_6] : memref<16x16xf32, #tpu.memory_space<vmem>>, vector<16x16xf32>
    %c0_7 = arith.constant 0 : index
    %c0_8 = arith.constant 0 : index
    %5 = vector.load %arg4[%c0_7, %c0_8] : memref<128x128xf32, #tpu.memory_space<vmem>>, vector<128x128xf32>
    %cst = arith.constant dense<0.000000e+00> : vector<16x128xf32>
    %6 = tpu.matmul %1, %5, %cst {dimension_numbers = #tpu.dot_dimension_numbers<[1], [0], [0], [1], [0, 0, 1, 1], [], []>} : vector<16x128xf32>, vector<128x128xf32>, vector<16x128xf32> -> vector<16x128xf32>
    %cst_9 = arith.constant dense<0.000000e+00> : vector<16x128xf32>
    %7 = tpu.matmul %4, %6, %cst_9 {dimension_numbers = #tpu.dot_dimension_numbers<[1], [0], [0], [1], [0, 0, 1, 1], [], []>} : vector<16x16xf32>, vector<16x128xf32>, vector<16x128xf32> -> vector<16x128xf32>
    %cst_10 = arith.constant 0.111111112 : f32
    %8 = vector.broadcast %cst_10 : f32 to vector<16x128xf32>
    %9 = arith.mulf %7, %8 : vector<16x128xf32>
    %cst_11 = arith.constant dense<0.000000e+00> : vector<16x128xf32>
    %10 = tpu.matmul %3, %5, %cst_11 {dimension_numbers = #tpu.dot_dimension_numbers<[1], [0], [0], [1], [0, 0, 1, 1], [], []>} : vector<16x128xf32>, vector<128x128xf32>, vector<16x128xf32> -> vector<16x128xf32>
    %cst_12 = arith.constant dense<0.000000e+00> : vector<16x128xf32>
    %11 = tpu.matmul %4, %10, %cst_12 {dimension_numbers = #tpu.dot_dimension_numbers<[1], [0], [0], [1], [0, 0, 1, 1], [], []>} : vector<16x16xf32>, vector<16x128xf32>, vector<16x128xf32> -> vector<16x128xf32>
    %cst_13 = arith.constant 0.111111112 : f32
    %12 = vector.broadcast %cst_13 : f32 to vector<16x128xf32>
    %13 = arith.mulf %11, %12 : vector<16x128xf32>
    %14 = arith.subf %1, %9 : vector<16x128xf32>
    %cst_14 = arith.constant dense<0.000000e+00> : vector<16x128xf32>
    %15 = tpu.matmul %14, %5, %cst_14 {dimension_numbers = #tpu.dot_dimension_numbers<[1], [0], [0], [1], [0, 0, 1, 1], [], []>} : vector<16x128xf32>, vector<128x128xf32>, vector<16x128xf32> -> vector<16x128xf32>
    %cst_15 = arith.constant dense<0.000000e+00> : vector<16x128xf32>
    %16 = tpu.matmul %4, %15, %cst_15 {dimension_numbers = #tpu.dot_dimension_numbers<[1], [0], [0], [1], [0, 0, 1, 1], [], []>} : vector<16x16xf32>, vector<16x128xf32>, vector<16x128xf32> -> vector<16x128xf32>
    %cst_16 = arith.constant 0.111111112 : f32
    %17 = vector.broadcast %cst_16 : f32 to vector<16x128xf32>
    %18 = arith.mulf %16, %17 : vector<16x128xf32>
    %19 = arith.subf %3, %13 : vector<16x128xf32>
    %cst_17 = arith.constant dense<0.000000e+00> : vector<16x128xf32>
    %20 = tpu.matmul %19, %5, %cst_17 {dimension_numbers = #tpu.dot_dimension_numbers<[1], [0], [0], [1], [0, 0, 1, 1], [], []>} : vector<16x128xf32>, vector<128x128xf32>, vector<16x128xf32> -> vector<16x128xf32>
    %cst_18 = arith.constant dense<0.000000e+00> : vector<16x128xf32>
    %21 = tpu.matmul %4, %20, %cst_18 {dimension_numbers = #tpu.dot_dimension_numbers<[1], [0], [0], [1], [0, 0, 1, 1], [], []>} : vector<16x16xf32>, vector<16x128xf32>, vector<16x128xf32> -> vector<16x128xf32>
    %cst_19 = arith.constant 0.111111112 : f32
    %22 = vector.broadcast %cst_19 : f32 to vector<16x128xf32>
    %23 = arith.mulf %21, %22 : vector<16x128xf32>
    %cst_20 = arith.constant 2.000000e+00 : f32
    %24 = vector.broadcast %cst_20 : f32 to vector<16x128xf32>
    %25 = arith.mulf %24, %9 : vector<16x128xf32>
    %26 = arith.mulf %25, %13 : vector<16x128xf32>
    %cst_21 = arith.constant 9.99999974E-5 : f32
    %27 = vector.broadcast %cst_21 : f32 to vector<16x128xf32>
    %28 = arith.addf %26, %27 : vector<16x128xf32>
    %cst_22 = arith.constant 2.000000e+00 : f32
    %29 = vector.broadcast %cst_22 : f32 to vector<16x128xf32>
    %30 = arith.mulf %29, %18 : vector<16x128xf32>
    %31 = arith.mulf %30, %23 : vector<16x128xf32>
    %cst_23 = arith.constant 8.99999984E-4 : f32
    %32 = vector.broadcast %cst_23 : f32 to vector<16x128xf32>
    %33 = arith.addf %31, %32 : vector<16x128xf32>
    %34 = arith.mulf %28, %33 : vector<16x128xf32>
    %35 = arith.mulf %9, %9 : vector<16x128xf32>
    %36 = arith.mulf %13, %13 : vector<16x128xf32>
    %37 = arith.addf %35, %36 : vector<16x128xf32>
    %cst_24 = arith.constant 9.99999974E-5 : f32
    %38 = vector.broadcast %cst_24 : f32 to vector<16x128xf32>
    %39 = arith.addf %37, %38 : vector<16x128xf32>
    %40 = arith.mulf %18, %18 : vector<16x128xf32>
    %41 = arith.mulf %23, %23 : vector<16x128xf32>
    %42 = arith.addf %40, %41 : vector<16x128xf32>
    %cst_25 = arith.constant 8.99999984E-4 : f32
    %43 = vector.broadcast %cst_25 : f32 to vector<16x128xf32>
    %44 = arith.addf %42, %43 : vector<16x128xf32>
    %45 = arith.mulf %39, %44 : vector<16x128xf32>
    %46 = tpu.reciprocal %45 {approx = true} : vector<16x128xf32> -> vector<16x128xf32>
    %47 = arith.mulf %34, %46 : vector<16x128xf32>
    %48 = arith.subf %1, %3 : vector<16x128xf32>
    %49 = vector.shape_cast %47 : vector<16x128xf32> to vector<1x16x128xf32>
    %cst_26 = arith.constant dense<0.000000e+00> : vector<1xf32>
    %50 = vector.multi_reduction <add>, %49, %cst_26 [1, 2] : vector<1x16x128xf32> to vector<1xf32>
    %51 = vector.shape_cast %50 : vector<1xf32> to vector<1x1x1xf32>
    %52 = vector.extract %51[0, 0, 0] : f32 from vector<1x1x1xf32>
    %53 = math.absf %48 : vector<16x128xf32>
    %54 = vector.shape_cast %53 : vector<16x128xf32> to vector<1x16x128xf32>
    %cst_27 = arith.constant dense<0.000000e+00> : vector<1xf32>
    %55 = vector.multi_reduction <add>, %54, %cst_27 [1, 2] : vector<1x16x128xf32> to vector<1xf32>
    %56 = vector.shape_cast %55 : vector<1xf32> to vector<1x1x1xf32>
    %57 = vector.extract %56[0, 0, 0] : f32 from vector<1x1x1xf32>
    %58 = arith.mulf %48, %48 : vector<16x128xf32>
    %59 = vector.shape_cast %58 : vector<16x128xf32> to vector<1x16x128xf32>
    %cst_28 = arith.constant dense<0.000000e+00> : vector<1xf32>
    %60 = vector.multi_reduction <add>, %59, %cst_28 [1, 2] : vector<1x16x128xf32> to vector<1xf32>
    %61 = vector.shape_cast %60 : vector<1xf32> to vector<1x1x1xf32>
    %62 = vector.extract %61[0, 0, 0] : f32 from vector<1x1x1xf32>
    %63 = tpu.iota {dimensions = array<i32: 1>} : vector<8x128xi32>
    %c0_i32 = arith.constant 0 : i32
    %64 = vector.broadcast %c0_i32 : i32 to vector<8x128xi32>
    %65 = arith.cmpi eq, %63, %64 : vector<8x128xi32>
    %c1_i32 = arith.constant 1 : i32
    %66 = vector.broadcast %c1_i32 : i32 to vector<8x128xi32>
    %67 = arith.cmpi eq, %63, %66 : vector<8x128xi32>
    %c2_i32 = arith.constant 2 : i32
    %68 = vector.broadcast %c2_i32 : i32 to vector<8x128xi32>
    %69 = arith.cmpi eq, %63, %68 : vector<8x128xi32>
    %cst_29 = arith.constant 0.000000e+00 : f32
    %70 = vector.broadcast %62 : f32 to vector<8x128xf32>
    %71 = vector.broadcast %cst_29 : f32 to vector<8x128xf32>
    %72 = arith.select %69, %70, %71 : vector<8x128xi1>, vector<8x128xf32>
    %73 = vector.broadcast %57 : f32 to vector<8x128xf32>
    %74 = arith.select %67, %73, %72 : vector<8x128xi1>, vector<8x128xf32>
    %75 = vector.broadcast %52 : f32 to vector<8x128xf32>
    %76 = arith.select %65, %75, %74 : vector<8x128xi1>, vector<8x128xf32>
    %c0_30 = arith.constant 0 : index
    %c0_31 = arith.constant 0 : index
    %c0_32 = arith.constant 0 : index
    %77 = vector.load %arg5[%c0_30, %c0_31, %c0_32] : memref<1x8x128xf32, #tpu.memory_space<vmem>>, vector<1x8x128xf32>
    %78 = vector.shape_cast %77 : vector<1x8x128xf32> to vector<8x128xf32>
    %79 = vector.shape_cast %76 : vector<8x128xf32> to vector<1x8x128xf32>
    tpu.vector_store %arg5[%c0_30, %c0_31, %c0_32], %79 {strides = array<i32>} : memref<1x8x128xf32, #tpu.memory_space<vmem>>, vector<1x8x128xf32>,
    return
  }
  func.func @transform_0(%arg0: i32) -> (i32, i32, i32) {
    %c0_i32 = arith.constant 0 : i32
    %c0_i32_0 = arith.constant 0 : i32
    %c0_i32_1 = arith.constant 0 : i32
    return %arg0, %c0_i32, %c0_i32_0 : i32, i32, i32
  }
  func.func @transform_1(%arg0: i32) -> (i32, i32, i32) {
    %c0_i32 = arith.constant 0 : i32
    %c0_i32_0 = arith.constant 0 : i32
    %c0_i32_1 = arith.constant 0 : i32
    return %arg0, %c0_i32, %c0_i32_0 : i32, i32, i32
  }
  func.func @transform_2(%arg0: i32) -> (i32, i32) {
    %c0_i32 = arith.constant 0 : i32
    %c0_i32_0 = arith.constant 0 : i32
    %c0_i32_1 = arith.constant 0 : i32
    return %c0_i32, %c0_i32_0 : i32, i32
  }
  func.func @transform_3(%arg0: i32) -> (i32, i32) {
    %c0_i32 = arith.constant 0 : i32
    %c0_i32_0 = arith.constant 0 : i32
    %c0_i32_1 = arith.constant 0 : i32
    return %c0_i32, %c0_i32_0 : i32, i32
  }
  func.func @transform_4(%arg0: i32) -> (i32, i32, i32) {
    %c0_i32 = arith.constant 0 : i32
    %c0_i32_0 = arith.constant 0 : i32
    %c0_i32_1 = arith.constant 0 : i32
    return %arg0, %c0_i32, %c0_i32_0 : i32, i32, i32
  }
}

</mosaic_0001>

<llo_original>
// kernel: tpu_custom_call.1
$region0: #{tpu_custom_call.1}
  #allocation0 [shape = 'u32[]', space=smem, size = 0x4, offset = 0x4, fixed_abs, tag = 'smem constant byte address 0x4 - core index']
  #allocation1 [shape = 'u32[72,128]{1,0:T(1,128)}', space=vmem, size = 0x9000, scoped, tag = 'internal scratch']
  %s0 = inlined_call_operand.hbm [shape: f32[1,16,128], index: 0, kind: input, shape index: {}]
  %s1 = inlined_call_operand.hbm [shape: f32[1,16,128], index: 1, kind: input, shape index: {}]
  %s2 = inlined_call_operand.hbm [shape: f32[16,16], index: 2, kind: input, shape index: {}]
  %s3 = inlined_call_operand.hbm [shape: f32[128,128], index: 3, kind: input, shape index: {}]
  %s4 = inlined_call_operand.hbm [shape: f32[1,8,128], index: 4, kind: output, shape index: {}]
  %s5 = sld [smem:[#allocation0]]
  $region42: #{tpu_custom_call.1} parent=0
    _
  %s7 = ssub.s32 1, %s5
  %s8 = scalar_select 0, %s7, %s5
  $region1: #{tpu_custom_call.1} parent=0
    #allocation2 [shape = 'u8[8192]{0}', space=vmem, size = 0x2000, scoped, tag = 'input window, operand 0, single buffered']
    #allocation3 [shape = 's32[1]{0}', space=sflag, size = 0x4, scoped, tag = 'scoped memory for tpu_custom_call.1']
    #allocation4 [shape = 's32[1]{0}', space=sflag, size = 0x4, scoped, tag = 'scoped memory for tpu_custom_call.1']
    #allocation5 [shape = 'u8[8192]{0}', space=vmem, size = 0x2000, scoped, tag = 'input window, operand 1, single buffered']
    #allocation6 [shape = 's32[1]{0}', space=sflag, size = 0x4, scoped, tag = 'scoped memory for tpu_custom_call.1']
    #allocation7 [shape = 'u8[8192]{0}', space=vmem, size = 0x2000, scoped, tag = 'input window, operand 2, single buffered']
    #allocation8 [shape = 'u8[65536]{0}', space=vmem, size = 0x10000, scoped, tag = 'input window, operand 3, single buffered']
    #allocation9 [shape = 's32[1]{0}', space=sflag, size = 0x4, scoped, tag = 'scoped memory for tpu_custom_call.1']
    #allocation10 [shape = 'u8[4096]{0}', space=vmem, size = 0x1000, scoped, tag = 'output window, operand 0, single buffered']
    %9 = vsyncpa [#allocation3], 0
    %10 = vsyncpa [#allocation6], 0
    %11 = vsyncpa [#allocation9], 0
    %12 = vsyncpa [#allocation4], 0
    // Predicated region
    $region2: #{tpu_custom_call.1} parent=1 // pred_check
      _
    $region3: #{tpu_custom_call.1} parent=1 // pred_check_branch
      %14 = sbr.rel (0) target = $region5
    $region4: #{tpu_custom_call.1} parent=1 // pred_region
      %16 = vsyncadd [#allocation3], 0
      %s17 = sshll.u32 %s0, 4
      %s18 = int_to_ptr.hbm [resolvable:$true] %s17
      %s19 = sshll.u32 [#allocation2], 4
      %s20 = int_to_ptr.vmem [resolvable:$true] %s19
      %25 = dma.hbm_to_vmem [thread:$0]  %s18, 256, %s20, [#allocation3], 128, 128, 8
    $region5: #{tpu_custom_call.1} parent=1 // pred_fallthru
      _
    // Predicated region
    $region6: #{tpu_custom_call.1} parent=1 // pred_check
      _
    $region7: #{tpu_custom_call.1} parent=1 // pred_check_branch
      %27 = sbr.rel (0) target = $region9
    $region8: #{tpu_custom_call.1} parent=1 // pred_region
      %29 = vsyncadd [#allocation6], 0
      %s30 = sshll.u32 %s1, 4
      %s31 = int_to_ptr.hbm [resolvable:$true] %s30
      %s32 = sshll.u32 [#allocation5], 4
      %s33 = int_to_ptr.vmem [resolvable:$true] %s32
      %38 = dma.hbm_to_vmem [thread:$0]  %s31, 256, %s33, [#allocation6], 128, 128, 8
    $region9: #{tpu_custom_call.1} parent=1 // pred_fallthru
      _
    // Predicated region
    $region10: #{tpu_custom_call.1} parent=1 // pred_check
      _
    $region11: #{tpu_custom_call.1} parent=1 // pred_check_branch
      %40 = sbr.rel (0) target = $region13
    $region12: #{tpu_custom_call.1} parent=1 // pred_region
      %42 = vsyncadd [#allocation6], 0
      %s43 = sshll.u32 %s2, 4
      %s44 = int_to_ptr.hbm [resolvable:$true] %s43
      %s45 = sshll.u32 [#allocation7], 4
      %s46 = int_to_ptr.vmem [resolvable:$true] %s45
      %51 = dma.hbm_to_vmem [thread:$0]  %s44, 256, %s46, [#allocation6], 128, 128, 8
    $region13: #{tpu_custom_call.1} parent=1 // pred_fallthru
      _
    // Predicated region
    $region14: #{tpu_custom_call.1} parent=1 // pred_check
      _
    $region15: #{tpu_custom_call.1} parent=1 // pred_check_branch
      %53 = sbr.rel (0) target = $region17
    $region16: #{tpu_custom_call.1} parent=1 // pred_region
      %55 = vsyncadd [#allocation9], 0
      %s56 = sshll.u32 %s3, 4
      %s57 = int_to_ptr.hbm [resolvable:$true] %s56
      %s58 = sshll.u32 [#allocation8], 4
      %s59 = int_to_ptr.vmem [resolvable:$true] %s58
      %64 = dma.hbm_to_vmem [thread:$0]  %s57, 2048, %s59, [#allocation9], 128, 128, 8
    $region17: #{tpu_custom_call.1} parent=1 // pred_fallthru
      _
    // Predicated region
    $region18: #{tpu_custom_call.1} parent=1 // pred_check
      _
    $region19: #{tpu_custom_call.1} parent=1 // pred_check_branch
      %66 = sbr.rel (0) target = $region21
    $region20: #{tpu_custom_call.1} parent=1 // pred_region
      %68 = dma.done [#allocation3], 256
    $region21: #{tpu_custom_call.1} parent=1 // pred_fallthru
      _
    // Predicated region
    $region22: #{tpu_custom_call.1} parent=1 // pred_check
      _
    $region23: #{tpu_custom_call.1} parent=1 // pred_check_branch
      %70 = sbr.rel (0) target = $region25
    $region24: #{tpu_custom_call.1} parent=1 // pred_region
      %72 = dma.done [#allocation6], 256
    $region25: #{tpu_custom_call.1} parent=1 // pred_fallthru
      _
    // Predicated region
    $region26: #{tpu_custom_call.1} parent=1 // pred_check
      _
    $region27: #{tpu_custom_call.1} parent=1 // pred_check_branch
      %74 = sbr.rel (0) target = $region29
    $region28: #{tpu_custom_call.1} parent=1 // pred_region
      %76 = dma.done [#allocation6], 256
    $region29: #{tpu_custom_call.1} parent=1 // pred_fallthru
      _
    // Predicated region
    $region30: #{tpu_custom_call.1} parent=1 // pred_check
      _
    $region31: #{tpu_custom_call.1} parent=1 // pred_check_branch
      %78 = sbr.rel (0) target = $region33
    $region32: #{tpu_custom_call.1} parent=1 // pred_region
      %80 = dma.done [#allocation9], 2048
    $region33: #{tpu_custom_call.1} parent=1 // pred_fallthru
      _
    %v81 = vld [vmem:[#allocation2] sm:$0xff]
    %v82 = vld [vmem:[#allocation2 + $0x8] sm:$0xff]
    %v83 = vld [vmem:[#allocation5] sm:$0xff]
    %v84 = vld [vmem:[#allocation5 + $0x8] sm:$0xff]
    %v85 = vld [vmem:[#allocation7] sm:$0xff]
    %v86 = vld [vmem:[#allocation7 + $0x8] sm:$0xff]
    %v87 = vld [vmem:[#allocation8] sm:$0xff]
    %v88 = vld [vmem:[#allocation8 + $0x8] sm:$0xff]
    %v89 = vld [vmem:[#allocation8 + $0x10] sm:$0xff]
    %v90 = vld [vmem:[#allocation8 + $0x18] sm:$0xff]
    %v91 = vld [vmem:[#allocation8 + $0x20] sm:$0xff]
    %v92 = vld [vmem:[#allocation8 + $0x28] sm:$0xff]
    %v93 = vld [vmem:[#allocation8 + $0x30] sm:$0xff]
    %v94 = vld [vmem:[#allocation8 + $0x38] sm:$0xff]
    %v95 = vld [vmem:[#allocation8 + $0x40] sm:$0xff]
    %v96 = vld [vmem:[#allocation8 + $0x48] sm:$0xff]
    %v97 = vld [vmem:[#allocation8 + $0x50] sm:$0xff]
    %v98 = vld [vmem:[#allocation8 + $0x58] sm:$0xff]
    %v99 = vld [vmem:[#allocation8 + $0x60] sm:$0xff]
    %v100 = vld [vmem:[#allocation8 + $0x68] sm:$0xff]
    %v101 = vld [vmem:[#allocation8 + $0x70] sm:$0xff]
    %v102 = vld [vmem:[#allocation8 + $0x78] sm:$0xff]
    %103 = vmatpush.msra.mxu0 %v102
    %104 = vmatpush.msra.mxu0 %v101
    %105 = vmatpush.msra.mxu0 %v100
    %106 = vmatpush.msra.mxu0 %v99
    %107 = vmatpush.msra.mxu0 %v98
    %108 = vmatpush.msra.mxu0 %v97
    %109 = vmatpush.msra.mxu0 %v96
    %110 = vmatpush.msra.mxu0 %v95
    %111 = vmatpush.msra.mxu0 %v94
    %112 = vmatpush.msra.mxu0 %v93
    %113 = vmatpush.msra.mxu0 %v92
    %114 = vmatpush.msra.mxu0 %v91
    %115 = vmatpush.msra.mxu0 %v90
    %116 = vmatpush.msra.mxu0 %v89
    %117 = vmatpush.msra.mxu0 %v88
    %118 = vmatpush.msra.mxu0 %v87
    %119 = vmatmul.f32.gmra.mxu0 %v81
    %v120 = vpop.f32.mrf.mxu0
    %v121 = vadd.f32 0.0, %v120
    %122 = vmatmul.f32.gmra.mxu0 %v82
    %v123 = vpop.f32.mrf.mxu0
    %v124 = vadd.f32 0.0, %v123
    %125 = vdwg.mxu0
    %vm126 = vcmask 130048
    %v128 = vsel %vm126, %v85, 0
    %v131 = vsel %vm126, %v86, 0
    %133 = vmatpush.msra.mxu0 0.0
    %134 = vmatpush.msra.mxu0 0.0
    %135 = vmatpush.msra.mxu0 0.0
    %136 = vmatpush.msra.mxu0 0.0
    %137 = vmatpush.msra.mxu0 0.0
    %138 = vmatpush.msra.mxu0 0.0
    %139 = vmatpush.msra.mxu0 0.0
    %140 = vmatpush.msra.mxu0 0.0
    %141 = vmatpush.msra.mxu0 0.0
    %142 = vmatpush.msra.mxu0 0.0
    %143 = vmatpush.msra.mxu0 0.0
    %144 = vmatpush.msra.mxu0 0.0
    %145 = vmatpush.msra.mxu0 0.0
    %146 = vmatpush.msra.mxu0 0.0
    %147 = vmatpush.msra.mxu0 %v124
    %148 = vmatpush.msra.mxu0 %v121
    %149 = vmatmul.f32.gmra.mxu0 %v128
    %v150 = vpop.f32.mrf.mxu0
    %v151 = vadd.f32 0.0, %v150
    %152 = vmatmul.f32.gmra.mxu0 %v131
    %v153 = vpop.f32.mrf.mxu0
    %v154 = vadd.f32 0.0, %v153
    %155 = vdwg.mxu0
    %v156 = vmul.f32 %v151, 0.11111111
    %v157 = vmul.f32 %v154, 0.11111111
    %158 = vmatpush.msra.mxu0 %v102
    %159 = vmatpush.msra.mxu0 %v101
    %160 = vmatpush.msra.mxu0 %v100
    %161 = vmatpush.msra.mxu0 %v99
    %162 = vmatpush.msra.mxu0 %v98
    %163 = vmatpush.msra.mxu0 %v97
    %164 = vmatpush.msra.mxu0 %v96
    %165 = vmatpush.msra.mxu0 %v95
    %166 = vmatpush.msra.mxu0 %v94
    %167 = vmatpush.msra.mxu0 %v93
    %168 = vmatpush.msra.mxu0 %v92
    %169 = vmatpush.msra.mxu0 %v91
    %170 = vmatpush.msra.mxu0 %v90
    %171 = vmatpush.msra.mxu0 %v89
    %172 = vmatpush.msra.mxu0 %v88
    %173 = vmatpush.msra.mxu0 %v87
    %174 = vmatmul.f32.gmra.mxu0 %v83
    %v175 = vpop.f32.mrf.mxu0
    %v176 = vadd.f32 0.0, %v175
    %177 = vmatmul.f32.gmra.mxu0 %v84
    %v178 = vpop.f32.mrf.mxu0
    %v179 = vadd.f32 0.0, %v178
    %180 = vdwg.mxu0
    %181 = vmatpush.msra.mxu0 0.0
    %182 = vmatpush.msra.mxu0 0.0
    %183 = vmatpush.msra.mxu0 0.0
    %184 = vmatpush.msra.mxu0 0.0
    %185 = vmatpush.msra.mxu0 0.0
    %186 = vmatpush.msra.mxu0 0.0
    %187 = vmatpush.msra.mxu0 0.0
    %188 = vmatpush.msra.mxu0 0.0
    %189 = vmatpush.msra.mxu0 0.0
    %190 = vmatpush.msra.mxu0 0.0
    %191 = vmatpush.msra.mxu0 0.0
    %192 = vmatpush.msra.mxu0 0.0
    %193 = vmatpush.msra.mxu0 0.0
    %194 = vmatpush.msra.mxu0 0.0
    %195 = vmatpush.msra.mxu0 %v179
    %196 = vmatpush.msra.mxu0 %v176
    %197 = vmatmul.f32.gmra.mxu0 %v128
    %v198 = vpop.f32.mrf.mxu0
    %v199 = vadd.f32 0.0, %v198
    %200 = vmatmul.f32.gmra.mxu0 %v131
    %v201 = vpop.f32.mrf.mxu0
    %v202 = vadd.f32 0.0, %v201
    %203 = vdwg.mxu0
    %v204 = vmul.f32 %v199, 0.11111111
    %v205 = vmul.f32 %v202, 0.11111111
    %v206 = vsub.f32 %v81, %v156
    %v207 = vsub.f32 %v82, %v157
    %208 = vmatpush.msra.mxu0 %v102
    %209 = vmatpush.msra.mxu0 %v101
    %210 = vmatpush.msra.mxu0 %v100
    %211 = vmatpush.msra.mxu0 %v99
    %212 = vmatpush.msra.mxu0 %v98
    %213 = vmatpush.msra.mxu0 %v97
    %214 = vmatpush.msra.mxu0 %v96
    %215 = vmatpush.msra.mxu0 %v95
    %216 = vmatpush.msra.mxu0 %v94
    %217 = vmatpush.msra.mxu0 %v93
    %218 = vmatpush.msra.mxu0 %v92
    %219 = vmatpush.msra.mxu0 %v91
    %220 = vmatpush.msra.mxu0 %v90
    %221 = vmatpush.msra.mxu0 %v89
    %222 = vmatpush.msra.mxu0 %v88
    %223 = vmatpush.msra.mxu0 %v87
    %224 = vmatmul.f32.gmra.mxu0 %v206
    %v225 = vpop.f32.mrf.mxu0
    %v226 = vadd.f32 0.0, %v225
    %227 = vmatmul.f32.gmra.mxu0 %v207
    %v228 = vpop.f32.mrf.mxu0
    %v229 = vadd.f32 0.0, %v228
    %230 = vdwg.mxu0
    %231 = vmatpush.msra.mxu0 0.0
    %232 = vmatpush.msra.mxu0 0.0
    %233 = vmatpush.msra.mxu0 0.0
    %234 = vmatpush.msra.mxu0 0.0
    %235 = vmatpush.msra.mxu0 0.0
    %236 = vmatpush.msra.mxu0 0.0
    %237 = vmatpush.msra.mxu0 0.0
    %238 = vmatpush.msra.mxu0 0.0
    %239 = vmatpush.msra.mxu0 0.0
    %240 = vmatpush.msra.mxu0 0.0
    %241 = vmatpush.msra.mxu0 0.0
    %242 = vmatpush.msra.mxu0 0.0
    %243 = vmatpush.msra.mxu0 0.0
    %244 = vmatpush.msra.mxu0 0.0
    %245 = vmatpush.msra.mxu0 %v229
    %246 = vmatpush.msra.mxu0 %v226
    %247 = vmatmul.f32.gmra.mxu0 %v128
    %v248 = vpop.f32.mrf.mxu0
    %v249 = vadd.f32 0.0, %v248
    %250 = vmatmul.f32.gmra.mxu0 %v131
    %v251 = vpop.f32.mrf.mxu0
    %v252 = vadd.f32 0.0, %v251
    %253 = vdwg.mxu0
    %v254 = vmul.f32 %v249, 0.11111111
    %v255 = vmul.f32 %v252, 0.11111111
    %v256 = vsub.f32 %v83, %v204
    %v257 = vsub.f32 %v84, %v205
    %258 = vmatpush.msra.mxu0 %v102
    %259 = vmatpush.msra.mxu0 %v101
    %260 = vmatpush.msra.mxu0 %v100
    %261 = vmatpush.msra.mxu0 %v99
    %262 = vmatpush.msra.mxu0 %v98
    %263 = vmatpush.msra.mxu0 %v97
    %264 = vmatpush.msra.mxu0 %v96
    %265 = vmatpush.msra.mxu0 %v95
    %266 = vmatpush.msra.mxu0 %v94
    %267 = vmatpush.msra.mxu0 %v93
    %268 = vmatpush.msra.mxu0 %v92
    %269 = vmatpush.msra.mxu0 %v91
    %270 = vmatpush.msra.mxu0 %v90
    %271 = vmatpush.msra.mxu0 %v89
    %272 = vmatpush.msra.mxu0 %v88
    %273 = vmatpush.msra.mxu0 %v87
    %274 = vmatmul.f32.gmra.mxu0 %v256
    %v275 = vpop.f32.mrf.mxu0
    %v276 = vadd.f32 0.0, %v275
    %277 = vmatmul.f32.gmra.mxu0 %v257
    %v278 = vpop.f32.mrf.mxu0
    %v279 = vadd.f32 0.0, %v278
    %280 = vdwg.mxu0
    %281 = vmatpush.msra.mxu0 0.0
    %282 = vmatpush.msra.mxu0 0.0
    %283 = vmatpush.msra.mxu0 0.0
    %284 = vmatpush.msra.mxu0 0.0
    %285 = vmatpush.msra.mxu0 0.0
    %286 = vmatpush.msra.mxu0 0.0
    %287 = vmatpush.msra.mxu0 0.0
    %288 = vmatpush.msra.mxu0 0.0
    %289 = vmatpush.msra.mxu0 0.0
    %290 = vmatpush.msra.mxu0 0.0
    %291 = vmatpush.msra.mxu0 0.0
    %292 = vmatpush.msra.mxu0 0.0
    %293 = vmatpush.msra.mxu0 0.0
    %294 = vmatpush.msra.mxu0 0.0
    %295 = vmatpush.msra.mxu0 %v279
    %296 = vmatpush.msra.mxu0 %v276
    %297 = vmatmul.f32.gmra.mxu0 %v128
    %v298 = vpop.f32.mrf.mxu0
    %v299 = vadd.f32 0.0, %v298
    %300 = vmatmul.f32.gmra.mxu0 %v131
    %v301 = vpop.f32.mrf.mxu0
    %v302 = vadd.f32 0.0, %v301
    %303 = vdwg.mxu0
    %v304 = vmul.f32 %v299, 0.11111111
    %v305 = vmul.f32 %v302, 0.11111111
    %v306 = vmul.f32 %v156, 2.0
    %v307 = vmul.f32 %v157, 2.0
    %v308 = vmul.f32 %v306, %v204
    %v309 = vmul.f32 %v307, %v205
    %v310 = vadd.f32 %v308, 0.0001
    %v311 = vadd.f32 %v309, 0.0001
    %v312 = vmul.f32 %v254, 2.0
    %v313 = vmul.f32 %v255, 2.0
    %v314 = vmul.f32 %v312, %v304
    %v315 = vmul.f32 %v313, %v305
    %v316 = vadd.f32 %v314, 0.0009
    %v317 = vadd.f32 %v315, 0.0009
    %v318 = vmul.f32 %v310, %v316
    %v319 = vmul.f32 %v311, %v317
    %v320 = vmul.f32 %v156, %v156
    %v321 = vmul.f32 %v157, %v157
    %v322 = vmul.f32 %v204, %v204
    %v323 = vmul.f32 %v205, %v205
    %v324 = vadd.f32 %v320, %v322
    %v325 = vadd.f32 %v321, %v323
    %v326 = vadd.f32 %v324, 0.0001
    %v327 = vadd.f32 %v325, 0.0001
    %v328 = vmul.f32 %v254, %v254
    %v329 = vmul.f32 %v255, %v255
    %v330 = vmul.f32 %v304, %v304
    %v331 = vmul.f32 %v305, %v305
    %v332 = vadd.f32 %v328, %v330
    %v333 = vadd.f32 %v329, %v331
    %v334 = vadd.f32 %v332, 0.0009
    %v335 = vadd.f32 %v333, 0.0009
    %v336 = vmul.f32 %v326, %v334
    %v337 = vmul.f32 %v327, %v335
    %v338 = vrcp.pop %v336
    %v339 = vrcp.pop %v337
    %v340 = vmul.f32 %v318, %v338
    %v341 = vmul.f32 %v319, %v339
    %v342 = vsub.f32 %v81, %v83
    %v343 = vsub.f32 %v82, %v84
    %v344 = vadd.f32 %v340, %v341
    %345 = vadd.xlane.f32.xlu0 %v344
    %v346 = vpop.xlane.xlu0 %345
    %v347 = vrot.slane %v346, 4
    %v348 = vadd.f32 %v346, %v347
    %v349 = vrot.slane %v348, 2
    %v350 = vadd.f32 %v348, %v349
    %v351 = vrot.slane %v350, 1
    %v352 = vadd.f32 %v350, %v351
    %s353 = vtos %v352
    %v354 = vand.u32 2147483647, %v342
    %v355 = vand.u32 2147483647, %v343
    %v356 = vadd.f32 %v354, %v355
    %357 = vadd.xlane.f32.xlu0 %v356
    %v358 = vpop.xlane.xlu0 %357
    %v359 = vrot.slane %v358, 4
    %v360 = vadd.f32 %v358, %v359
    %v361 = vrot.slane %v360, 2
    %v362 = vadd.f32 %v360, %v361
    %v363 = vrot.slane %v362, 1
    %v364 = vadd.f32 %v362, %v363
    %s365 = vtos %v364
    %v366 = vmul.f32 %v342, %v342
    %v367 = vmul.f32 %v343, %v343
    %v368 = vadd.f32 %v366, %v367
    %369 = vadd.xlane.f32.xlu0 %v368
    %v370 = vpop.xlane.xlu0 %369
    %v371 = vrot.slane %v370, 4
    %v372 = vadd.f32 %v370, %v371
    %v373 = vrot.slane %v372, 2
    %v374 = vadd.f32 %v372, %v373
    %v375 = vrot.slane %v374, 1
    %v376 = vadd.f32 %v374, %v375
    %s377 = vtos %v376
    %v378 = vlaneseq
    %v379 = vand.u32 %v378, 127
    %vm380 = vcmp.eq.s32.totalorder %v379, 0
    %vm381 = vcmp.eq.s32.totalorder %v379, 1
    %vm382 = vcmp.eq.s32.totalorder %v379, 2
    %v383 = vstv %s377
    %v384 = vsel %vm382, %v383, 0.0
    %v385 = vstv %s365
    %v386 = vsel %vm381, %v385, %v384
    %v387 = vstv %s353
    %v388 = vsel %vm380, %v387, %v386
    %389 = vst [vmem:[#allocation10] sm:$0xff] %v388
    // Predicated region
    $region34: #{tpu_custom_call.1} parent=1 // pred_check
      _
    $region35: #{tpu_custom_call.1} parent=1 // pred_check_branch
      %391 = sbr.rel (0) target = $region37
    $region36: #{tpu_custom_call.1} parent=1 // pred_region
      %393 = vsyncadd [#allocation4], 0
      %s395 = sshll.u32 [#allocation10], 4
      %s396 = int_to_ptr.vmem [resolvable:$true] %s395
      %s397 = sshll.u32 %s4, 4
      %s398 = int_to_ptr.hbm [resolvable:$true] %s397
      %400 = dma.vmem_to_hbm [thread:$0]  %s396, 128, %s398, [#allocation4]
    $region37: #{tpu_custom_call.1} parent=1 // pred_fallthru
      _
    // Predicated region
    $region38: #{tpu_custom_call.1} parent=1 // pred_check
      _
    $region39: #{tpu_custom_call.1} parent=1 // pred_check_branch
      %402 = sbr.rel (0) target = $region41
    $region40: #{tpu_custom_call.1} parent=1 // pred_region
      %404 = dma.done [#allocation4], 128
    $region41: #{tpu_custom_call.1} parent=1 // pred_fallthru
      _
    %405 = vsyncpa [#allocation3], 1
    %406 = vsyncpa [#allocation6], 1
    %407 = vsyncpa [#allocation9], 1
    %408 = vsyncpa [#allocation4], 1

</llo_original>
